<compile_context>
chip_gen: v7x
topology: tpu7x:2x2x1
jax: 0.10.0
libtpu: 0.0.40
codegen_flags: <defaults>
</compile_context>

<pallas_src>
import numpy as np
import jax
import jax.numpy as jnp
from jax.experimental import pallas as pl
from jax.experimental.pallas import tpu as pltpu


def time2vec_kernel(tau_ref, einv_ref, w_ref, b_ref, mask_ref, scale_ref, out_ref):
    # tau_ref  : (TMp, P)    P logical rows packed per vreg row (streamed)
    # einv_ref : (P,   P*L)  block-diag expansion * 1/interval   (VMEM resident)
    # w_ref    : (P*L, P*K)  block-diagonal [w | w0]             (VMEM resident)
    # b_ref    : (1,   P*K)  [b | b0] tiled P times              (VMEM resident)
    # mask_ref : (1,   P*K)  int32: 1 -> cos column, 0 -> linear (VMEM resident)
    # scale_ref: (1,)        SMEM scalar
    # out_ref  : (TMp, P*K)
    #
    # Expand each tau into its L interval slots and scale by 1/interval with a
    # tiny MXU matmul (the kernel is HBM-bound, the MXU slot is idle).
    q = jnp.dot(tau_ref[...], einv_ref[...], preferred_element_type=jnp.float32)
    tr = q - jnp.floor(q)            # == (tau % interval) / interval, interval > 0
    z = jnp.dot(tr, w_ref[...], preferred_element_type=jnp.float32) + b_ref[...]
    v = jnp.where(mask_ref[...] != 0, jnp.cos(z), z)
    out_ref[...] = (v * scale_ref[0]).astype(out_ref.dtype)


def _tpu_generation():
    try:
        kind = jax.devices()[0].device_kind.lower()
    except Exception:
        return None
    for g in (7, 6, 5, 4):
        if "v%d" % g in kind:
            return g
    return None


def _vmem_block_bytes(rows, cols, itemsize):
    # (8,128)-tiled VMEM layout: narrow lane blocks still occupy 128-lane tiles.
    sub = ((rows + 7) // 8) * 8
    lanes = max(128, ((cols + 127) // 128) * 128)
    return sub * lanes * itemsize


def time2vec_forward(tau, time_intervals, w, b, w0, b0, scale, *,
                     tm_packed=None, out_dtype=jnp.float32):
    """tau: (B, I); returns (B, I, K) with K = w.shape[1] + 1."""
    B, I = tau.shape
    L = int(time_intervals.shape[0])
    K = int(w.shape[1]) + 1
    M = B * I

    # Lane packing: P logical rows share one 128-lane vreg row.  When K does not
    # divide 128, P*K < 128 and output stores fall back to partially-masked vst
    # (still correct, just not the full-width store path).
    P = max(1, 128 // K)

    gen = _tpu_generation()
    if tm_packed is None:
        # Big enough that the ~0.35us fixed per-step overhead is amortized
        # against the per-step DMA on each generation's HBM bandwidth.
        tm_packed = {7: 16384, 6: 8192, 5: 8192}.get(gen, 8192)

    out_itemsize = jnp.dtype(out_dtype).itemsize
    Mp = int(pl.cdiv(M, P))                                   # packed rows needed
    TMp = max(8, (min(int(tm_packed), ((Mp + 7) // 8) * 8) // 8) * 8)

    # Keep double-buffered tau + out blocks inside a per-generation VMEM budget
    # (v7x has only 64 MiB physical per TC).
    budget = {7: 40 << 20, 6: 48 << 20, 5: 48 << 20}.get(gen, 28 << 20)

    def _need(tmp):
        return (2 * (_vmem_block_bytes(tmp, P, 4)
                     + _vmem_block_bytes(tmp, P * K, out_itemsize))
                + (1 << 20))                                   # residents + slack

    while _need(TMp) > budget and TMp > 8:
        TMp = max(8, (TMp // 2 // 8) * 8)

    # v7x has 2 TensorCores sharing the "parallel" grid axis: make sure there
    # are at least 2 grid steps so neither core idles.
    if gen == 7 and Mp > 8 and int(pl.cdiv(Mp, TMp)) < 2:
        TMp = max(8, ((-(-Mp // 2)) + 7) // 8 * 8)

    Mp_pad = int(pl.cdiv(Mp, TMp)) * TMp
    grid = (Mp_pad // TMp,)

    # --- host-side layout plumbing (tiny constants + a cheap tau repack) -----
    f32 = jnp.float32
    tau_flat = tau.reshape(M).astype(f32)
    padded = (Mp_pad * P != M)
    if padded:
        tau_flat = jnp.pad(tau_flat, (0, Mp_pad * P - M))      # zero padding
    tau_packed = tau_flat.reshape(Mp_pad, P)                   # no L-fold expansion

    inv = (1.0 / time_intervals.astype(f32)).reshape(1, L)
    eye_p = jnp.eye(P, dtype=f32)
    einv = jnp.kron(eye_p, inv)                                # (P, P*L)

    w_full = jnp.concatenate([w, w0], axis=1).astype(f32)      # (L, K)
    b_full = jnp.concatenate([b, b0], axis=0).astype(f32)      # (K,)
    w_bd = jnp.kron(eye_p, w_full)                             # (P*L, P*K)
    b_tiled = jnp.tile(b_full, P).reshape(1, P * K)

    col = np.arange(P * K) % K
    cos_mask = jnp.asarray((col < (K - 1)).astype(np.int32)).reshape(1, P * K)

    scale_smem = scale.reshape(1).astype(f32)

    vmem_limit = int(min(max(_need(TMp) + (4 << 20), 16 << 20), 60 << 20))

    out_packed = pl.pallas_call(
        time2vec_kernel,
        out_shape=jax.ShapeDtypeStruct((Mp_pad, P * K), out_dtype),
        grid=grid,
        in_specs=[
            pl.BlockSpec((TMp, P), lambda i: (i, 0)),          # streamed tau
            pl.BlockSpec((P, P * L), lambda i: (0, 0)),        # resident expansion
            pl.BlockSpec((P * L, P * K), lambda i: (0, 0)),    # resident weights
            pl.BlockSpec((1, P * K), lambda i: (0, 0)),        # resident bias
            pl.BlockSpec((1, P * K), lambda i: (0, 0)),        # resident cos mask
            pl.BlockSpec(memory_space=pltpu.MemorySpace.SMEM), # scalar scale
        ],
        out_specs=pl.BlockSpec((TMp, P * K), lambda i: (i, 0)),
        compiler_params=pltpu.CompilerParams(
            dimension_semantics=("parallel",),
            vmem_limit_bytes=vmem_limit),
    )(tau_packed, einv, w_bd, b_tiled, cos_mask, scale_smem)

    # (Mp_pad, P*K) row-major is the same bytes as (Mp_pad*P, K) row-major.
    out_rows = out_packed.reshape(Mp_pad * P, K)
    if padded:
        # TODO(synk): this trim costs one extra pass over the output; pad B*I at
        # the caller (or pick M % (TMp*P) == 0) to make the epilogue free.
        out_rows = out_rows[:M]
    return out_rows.reshape(B, I, K)


def time2vec_reference(tau, time_intervals, w, b, w0, b0, scale):
    """Pure-JAX reference mirroring the PyTorch module (mod-then-divide)."""
    tau_vec = tau[..., None].astype(jnp.float32)               # (B, I, 1)
    ti = time_intervals.reshape(1, 1, -1).astype(jnp.float32)
    tr = jnp.mod(tau_vec, ti) / ti                             # (B, I, L)
    v1 = jnp.cos(jnp.matmul(tr, w) + b)                        # (B, I, K-1)
    v2 = jnp.matmul(tr, w0) + b0                               # (B, I, 1)
    return jnp.concatenate([v1, v2], axis=-1) * scale          # (B, I, K)


if __name__ == "__main__":
    # Small, deterministic setup consistent with the module's __init__.
    B, I = 2, 40                                  # batch, number of timestamps
    time_intervals = jnp.asarray(
        np.array([1.0, 7.0, 24.0, 365.0], dtype=np.float32))   # L = 4
    L = time_intervals.shape[0]
    K = 32                                        # out_features

    key = jax.random.PRNGKey(0)
    k_tau, k_w0, k_b0, k_w, k_b = jax.random.split(key, 5)

    w0 = jax.random.normal(k_w0, (L, 1), dtype=jnp.float32)
    b0 = jax.random.normal(k_b0, (1,), dtype=jnp.float32)
    w = jax.random.normal(k_w, (L, K - 1), dtype=jnp.float32)
    b = jax.random.normal(k_b, (K - 1,), dtype=jnp.float32)
    scale = jnp.ones((1,), dtype=jnp.float32) * (K ** -0.5)

    # Positive "timestamp"-like inputs.
    tau = jax.random.uniform(k_tau, (B, I), dtype=jnp.float32,
                             minval=0.0, maxval=1000.0)

    ref = time2vec_reference(tau, time_intervals, w, b, w0, b0, scale)

    # Default (per-generation) tile.
    out = time2vec_forward(tau, time_intervals, w, b, w0, b0, scale)
    out = jax.block_until_ready(out)
    assert out.shape == (B, I, K), out.shape
    # frac(tau*inv) vs mod-then-divide differs by a few ulps -> 1e-4 tolerance.
    assert jnp.allclose(out, ref, atol=1e-4, rtol=1e-4), "mismatch vs reference"

    # Tiny tile to exercise multi-step grid streaming + row padding path.
    out2 = time2vec_forward(tau, time_intervals, w, b, w0, b0, scale,
                            tm_packed=8)
    out2 = jax.block_until_ready(out2)
    assert jnp.allclose(out2, ref, atol=1e-4, rtol=1e-4), "mismatch (tiled) vs reference"

    # Optional bf16 output path (halves the dominant HBM write traffic).
    out3 = time2vec_forward(tau, time_intervals, w, b, w0, b0, scale,
                            out_dtype=jnp.bfloat16)
    out3 = jax.block_until_ready(out3)
    assert jnp.allclose(out3.astype(jnp.float32), ref, atol=1e-2, rtol=1e-2), \
        "mismatch (bf16) vs reference"

    print("KERNEL_OK")
</pallas_src>

<mosaic_0001>
module attributes {stable_mosaic.version = 11 : i64} {
  func.func @time2vec_kernel(%arg0: i32, %arg1: memref<24x4xf32, #tpu.memory_space<vmem>>, %arg2: memref<4x16xf32, #tpu.memory_space<vmem>>, %arg3: memref<16x128xf32, #tpu.memory_space<vmem>>, %arg4: memref<1x128xf32, #tpu.memory_space<vmem>>, %arg5: memref<1x128xi32, #tpu.memory_space<vmem>>, %arg6: memref<1xf32, #tpu.memory_space<smem>>, %arg7: memref<24x128xf32, #tpu.memory_space<vmem>>) attributes {dimension_semantics = [#tpu.dimension_semantics<parallel>], iteration_bounds = array<i64: 1>, scalar_prefetch = 0 : i64, scratch_operands = 0 : i64, tpu.core_type = #tpu.core_type<tc>, window_params = [{transform_indices = @transform_0, window_bounds = array<i64: 24, 4>}, {pipeline_mode = #tpu.pipeline_mode<synchronous>, transform_indices = @transform_1, window_bounds = array<i64: 4, 16>}, {pipeline_mode = #tpu.pipeline_mode<synchronous>, transform_indices = @transform_2, window_bounds = array<i64: 16, 128>}, {pipeline_mode = #tpu.pipeline_mode<synchronous>, transform_indices = @transform_3, window_bounds = array<i64: 1, 128>}, {pipeline_mode = #tpu.pipeline_mode<synchronous>, transform_indices = @transform_4, window_bounds = array<i64: 1, 128>}, {transform_indices = @transform_5, window_bounds = array<i64: 1>}, {transform_indices = @transform_6, window_bounds = array<i64: 24, 128>}]} {
    %c0 = arith.constant 0 : index
    %c0_0 = arith.constant 0 : index
    %0 = vector.load %arg1[%c0, %c0_0] : memref<24x4xf32, #tpu.memory_space<vmem>>, vector<24x4xf32>
    %c0_1 = arith.constant 0 : index
    %c0_2 = arith.constant 0 : index
    %1 = vector.load %arg2[%c0_1, %c0_2] : memref<4x16xf32, #tpu.memory_space<vmem>>, vector<4x16xf32>
    %cst = arith.constant dense<0.000000e+00> : vector<24x16xf32>
    %2 = tpu.matmul %0, %1, %cst {dimension_numbers = #tpu.dot_dimension_numbers<[1], [0], [0], [1], [0, 0, 1, 1], [], []>} : vector<24x4xf32>, vector<4x16xf32>, vector<24x16xf32> -> vector<24x16xf32>
    %3 = math.floor %2 : vector<24x16xf32>
    %4 = arith.subf %2, %3 : vector<24x16xf32>
    %c0_3 = arith.constant 0 : index
    %c0_4 = arith.constant 0 : index
    %5 = vector.load %arg3[%c0_3, %c0_4] : memref<16x128xf32, #tpu.memory_space<vmem>>, vector<16x128xf32>
    %cst_5 = arith.constant dense<0.000000e+00> : vector<24x128xf32>
    %6 = tpu.matmul %4, %5, %cst_5 {dimension_numbers = #tpu.dot_dimension_numbers<[1], [0], [0], [1], [0, 0, 1, 1], [], []>} : vector<24x16xf32>, vector<16x128xf32>, vector<24x128xf32> -> vector<24x128xf32>
    %c0_6 = arith.constant 0 : index
    %c0_7 = arith.constant 0 : index
    %7 = vector.load %arg4[%c0_6, %c0_7] : memref<1x128xf32, #tpu.memory_space<vmem>>, vector<1x128xf32>
    %8 = vector.broadcast %7 : vector<1x128xf32> to vector<24x128xf32>
    %9 = arith.addf %6, %8 : vector<24x128xf32>
    %c0_8 = arith.constant 0 : index
    %c0_9 = arith.constant 0 : index
    %10 = vector.load %arg5[%c0_8, %c0_9] : memref<1x128xi32, #tpu.memory_space<vmem>>, vector<1x128xi32>
    %c0_i32 = arith.constant 0 : i32
    %11 = vector.broadcast %c0_i32 : i32 to vector<1x128xi32>
    %12 = arith.cmpi ne, %10, %11 : vector<1x128xi32>
    %13 = math.cos %9 : vector<24x128xf32>
    %14 = vector.shape_cast %12 : vector<1x128xi1> to vector<1x128xi1>
    %15 = vector.broadcast %14 : vector<1x128xi1> to vector<24x128xi1>
    %16 = arith.select %15, %13, %9 : vector<24x128xi1>, vector<24x128xf32>
    %c0_10 = arith.constant 0 : index
    %17 = memref.load %arg6[%c0_10] : memref<1xf32, #tpu.memory_space<smem>>
    %18 = vector.broadcast %17 : f32 to vector<24x128xf32>
    %19 = arith.mulf %16, %18 : vector<24x128xf32>
    %c0_11 = arith.constant 0 : index
    %c0_12 = arith.constant 0 : index
    %20 = vector.load %arg7[%c0_11, %c0_12] : memref<24x128xf32, #tpu.memory_space<vmem>>, vector<24x128xf32>
    tpu.vector_store %arg7[%c0_11, %c0_12], %19 {strides = array<i32>} : memref<24x128xf32, #tpu.memory_space<vmem>>, vector<24x128xf32>,
    return
  }
  func.func @transform_0(%arg0: i32) -> (i32, i32) {
    %c0_i32 = arith.constant 0 : i32
    %c0_i32_0 = arith.constant 0 : i32
    return %arg0, %c0_i32 : i32, i32
  }
  func.func @transform_1(%arg0: i32) -> (i32, i32) {
    %c0_i32 = arith.constant 0 : i32
    %c0_i32_0 = arith.constant 0 : i32
    %c0_i32_1 = arith.constant 0 : i32
    return %c0_i32, %c0_i32_0 : i32, i32
  }
  func.func @transform_2(%arg0: i32) -> (i32, i32) {
    %c0_i32 = arith.constant 0 : i32
    %c0_i32_0 = arith.constant 0 : i32
    %c0_i32_1 = arith.constant 0 : i32
    return %c0_i32, %c0_i32_0 : i32, i32
  }
  func.func @transform_3(%arg0: i32) -> (i32, i32) {
    %c0_i32 = arith.constant 0 : i32
    %c0_i32_0 = arith.constant 0 : i32
    %c0_i32_1 = arith.constant 0 : i32
    return %c0_i32, %c0_i32_0 : i32, i32
  }
  func.func @transform_4(%arg0: i32) -> (i32, i32) {
    %c0_i32 = arith.constant 0 : i32
    %c0_i32_0 = arith.constant 0 : i32
    %c0_i32_1 = arith.constant 0 : i32
    return %c0_i32, %c0_i32_0 : i32, i32
  }
  func.func @transform_5(%arg0: i32) -> i32 {
    %c0_i32 = arith.constant 0 : i32
    %c0_i32_0 = arith.constant 0 : i32
    return %c0_i32 : i32
  }
  func.func @transform_6(%arg0: i32) -> (i32, i32) {
    %c0_i32 = arith.constant 0 : i32
    %c0_i32_0 = arith.constant 0 : i32
    return %arg0, %c0_i32 : i32, i32
  }
}

</mosaic_0001>

<llo_original>
// kernel: tpu_custom_call.1
$region0: #{tpu_custom_call.1}
  #allocation0 [shape = 'u32[]', space=smem, size = 0x4, offset = 0x4, fixed_abs, tag = 'smem constant byte address 0x4 - core index']
  #allocation1 [shape = 'u32[144,128]{1,0:T(1,128)}', space=vmem, size = 0x12000, scoped, tag = 'internal scratch']
  #allocation2 [shape = 'f32[1]{0:T(128)S(6)}', space=smem, size = 0x200, scoped, tag = 'scoped memory for tpu_custom_call.1']
  %s0 = inlined_call_operand.vmem [shape: f32[24,4], index: 0, kind: input, shape index: {}]
  %s1 = inlined_call_operand.vmem [shape: f32[4,16], index: 1, kind: input, shape index: {}]
  %s2 = inlined_call_operand.vmem [shape: f32[16,128], index: 2, kind: input, shape index: {}]
  %s3 = inlined_call_operand.vmem [shape: f32[1,128], index: 3, kind: input, shape index: {}]
  %s4 = inlined_call_operand.vmem [shape: s32[1,128], index: 4, kind: input, shape index: {}]
  %s5 = inlined_call_operand.<no memory space> [shape: f32[1], index: 5, kind: input, shape index: {}]
  %s6 = inlined_call_operand.hbm [shape: f32[24,128], index: 6, kind: output, shape index: {}]
  %s7 = sld [smem:[#allocation0]]
  $region34: #{tpu_custom_call.1} parent=0
    _
  %s9 = ssub.s32 1, %s7
  %s10 = scalar_select 0, %s9, %s7
  %11 = sst [smem:[#allocation2]] %s5
  $region1: #{tpu_custom_call.1} parent=0
    #allocation3 [shape = 'u8[12288]{0}', space=vmem, size = 0x3000, scoped, tag = 'output window, operand 0, single buffered']
    #allocation4 [shape = 's32[1]{0}', space=sflag, size = 0x4, scoped, tag = 'scoped memory for tpu_custom_call.1']
    %12 = vsyncpa [#allocation4], 0
    // Predicated region
    $region2: #{tpu_custom_call.1} parent=1 // pred_check
      _
    $region3: #{tpu_custom_call.1} parent=1 // pred_check_branch
      %14 = sbr.rel (0) target = $region5
    $region4: #{tpu_custom_call.1} parent=1 // pred_region
      _
    $region5: #{tpu_custom_call.1} parent=1 // pred_fallthru
      _
    // Predicated region
    $region6: #{tpu_custom_call.1} parent=1 // pred_check
      _
    $region7: #{tpu_custom_call.1} parent=1 // pred_check_branch
      %16 = sbr.rel (0) target = $region9
    $region8: #{tpu_custom_call.1} parent=1 // pred_region
      _
    $region9: #{tpu_custom_call.1} parent=1 // pred_fallthru
      _
    // Predicated region
    $region10: #{tpu_custom_call.1} parent=1 // pred_check
      _
    $region11: #{tpu_custom_call.1} parent=1 // pred_check_branch
      %18 = sbr.rel (0) target = $region13
    $region12: #{tpu_custom_call.1} parent=1 // pred_region
      _
    $region13: #{tpu_custom_call.1} parent=1 // pred_fallthru
      _
    // Predicated region
    $region14: #{tpu_custom_call.1} parent=1 // pred_check
      _
    $region15: #{tpu_custom_call.1} parent=1 // pred_check_branch
      %20 = sbr.rel (0) target = $region17
    $region16: #{tpu_custom_call.1} parent=1 // pred_region
      _
    $region17: #{tpu_custom_call.1} parent=1 // pred_fallthru
      _
    // Predicated region
    $region18: #{tpu_custom_call.1} parent=1 // pred_check
      _
    $region19: #{tpu_custom_call.1} parent=1 // pred_check_branch
      %22 = sbr.rel (0) target = $region21
    $region20: #{tpu_custom_call.1} parent=1 // pred_region
      _
    $region21: #{tpu_custom_call.1} parent=1 // pred_fallthru
      _
    // Predicated region
    $region22: #{tpu_custom_call.1} parent=1 // pred_check
      _
    $region23: #{tpu_custom_call.1} parent=1 // pred_check_branch
      %24 = sbr.rel (0) target = $region25
    $region24: #{tpu_custom_call.1} parent=1 // pred_region
      _
    $region25: #{tpu_custom_call.1} parent=1 // pred_fallthru
      _
    %v25 = vld [vmem:[%s0] sm:$0xff]
    %v26 = vld [vmem:[%s0 + $0x8] sm:$0xff]
    %v27 = vld [vmem:[%s0 + $0x10] sm:$0xff]
    %v28 = vld [vmem:[%s1] sm:$0xf]
    %vm29 = vcmask 31744
    %v31 = vsel %vm29, %v25, 0
    %v34 = vsel %vm29, %v26, 0
    %v37 = vsel %vm29, %v27, 0
    %vm39 = vcmask 1043456
    %v41 = vsel %vm39, %v28, 0
    %43 = vmatprep.subr.mxu0 0.0
    %44 = vmatpush1.msra.mxu0 %v41
    %45 = vmatprep.subr.mxu0 0.0
    %46 = vmatpush1.msra.mxu0 0.0
    %47 = vmatprep.subr.mxu0 0.0
    %48 = vmatpush1.msra.mxu0 0.0
    %49 = vmatprep.subr.mxu0 0.0
    %50 = vmatpush1.msra.mxu0 0.0
    %51 = vmatprep.subr.mxu0 0.0
    %52 = vmatpush1.msra.mxu0 0.0
    %53 = vmatprep.subr.mxu0 0.0
    %54 = vmatpush1.msra.mxu0 0.0
    %55 = vmatprep.subr.mxu0 0.0
    %56 = vmatpush1.msra.mxu0 0.0
    %57 = vmatprep.subr.mxu0 0.0
    %58 = vmatpush1.msra.mxu0 0.0
    %59 = vmatprep.subr.mxu0 0.0
    %60 = vmatpush1.msra.mxu0 0.0
    %61 = vmatprep.subr.mxu0 0.0
    %62 = vmatpush1.msra.mxu0 0.0
    %63 = vmatprep.subr.mxu0 0.0
    %64 = vmatpush1.msra.mxu0 0.0
    %65 = vmatprep.subr.mxu0 0.0
    %66 = vmatpush1.msra.mxu0 0.0
    %67 = vmatprep.subr.mxu0 0.0
    %68 = vmatpush1.msra.mxu0 0.0
    %69 = vmatprep.subr.mxu0 0.0
    %70 = vmatpush1.msra.mxu0 0.0
    %71 = vmatprep.subr.mxu0 0.0
    %72 = vmatpush1.msra.mxu0 0.0
    %73 = vmatprep.subr.mxu0 0.0
    %74 = vmatpush1.msra.mxu0 0.0
    %75 = vmatprep.subr.mxu0 0.0
    %76 = vmatpush1.msra.mxu0 0.0
    %77 = vmatprep.subr.mxu0 0.0
    %78 = vmatpush1.msra.mxu0 0.0
    %79 = vmatprep.subr.mxu0 0.0
    %80 = vmatpush1.msra.mxu0 0.0
    %81 = vmatprep.subr.mxu0 0.0
    %82 = vmatpush1.msra.mxu0 0.0
    %83 = vmatprep.subr.mxu0 0.0
    %84 = vmatpush1.msra.mxu0 0.0
    %85 = vmatprep.subr.mxu0 0.0
    %86 = vmatpush1.msra.mxu0 0.0
    %87 = vmatprep.subr.mxu0 0.0
    %88 = vmatpush1.msra.mxu0 0.0
    %89 = vmatprep.subr.mxu0 0.0
    %90 = vmatpush1.msra.mxu0 0.0
    %91 = vmatprep.subr.mxu0 0.0
    %92 = vmatpush1.msra.mxu0 0.0
    %93 = vmatprep.subr.mxu0 0.0
    %94 = vmatpush1.msra.mxu0 0.0
    %95 = vmatprep.subr.mxu0 0.0
    %96 = vmatpush1.msra.mxu0 0.0
    %97 = vmatprep.subr.mxu0 0.0
    %98 = vmatpush1.msra.mxu0 0.0
    %99 = vmatprep.subr.mxu0 0.0
    %100 = vmatpush1.msra.mxu0 0.0
    %101 = vmatprep.subr.mxu0 0.0
    %102 = vmatpush1.msra.mxu0 0.0
    %103 = vmatprep.subr.mxu0 0.0
    %104 = vmatpush1.msra.mxu0 0.0
    %105 = vmatprep.subr.mxu0 0.0
    %106 = vmatpush1.msra.mxu0 0.0
    %107 = vmatprep.mubr.f32.mxu0 0.0
    %108 = vmatmul.mubr.f32.gmra.mrb[0].mxu0 %v31
    %v109 = vpop.f32.mrb[0].mxu0
    %v110 = vadd.f32 0.0, %v109
    %v111 = vpop.f32.mrb[0].mxu0
    %112 = vmatprep.mubr.f32.mxu0 0.0
    %113 = vmatmul.mubr.f32.gmra.mrb[0].mxu0 %v34
    %v114 = vpop.f32.mrb[0].mxu0
    %v115 = vadd.f32 0.0, %v114
    %v116 = vpop.f32.mrb[0].mxu0
    %117 = vmatprep.mubr.f32.mxu0 0.0
    %118 = vmatmul.mubr.f32.gmra.mrb[0].mxu0 %v37
    %v119 = vpop.f32.mrb[0].mxu0
    %v120 = vadd.f32 0.0, %v119
    %v121 = vpop.f32.mrb[0].mxu0
    %122 = vdwg.mxu0
    %v123 = vfloor.f32 %v110
    %v124 = vfloor.f32 %v115
    %v125 = vfloor.f32 %v120
    %v126 = vsub.f32 %v110, %v123
    %v127 = vsub.f32 %v115, %v124
    %v128 = vsub.f32 %v120, %v125
    %v129 = vld [vmem:[%s2] sm:$0xff]
    %v130 = vld [vmem:[%s2 + $0x8] sm:$0xff]
    %v131 = vld [vmem:[%s3] sm:$0x1]
    %v133 = vlaneseq
    %v134 = vshrl.u32 %v133, 7
    %v135 = vsub.s32 0, %v134
    %v136 = vrot.slane %v131, %v135
    %vm138 = vcmask 130048
    %v140 = vsel %vm138, %v126, 0
    %v143 = vsel %vm138, %v127, 0
    %v146 = vsel %vm138, %v128, 0
    %148 = vmatprep.subr.mxu0 0.0
    %149 = vmatpush1.msra.mxu0 %v129
    %150 = vmatprep.subr.mxu0 0.0
    %151 = vmatpush1.msra.mxu0 %v130
    %152 = vmatprep.subr.mxu0 0.0
    %153 = vmatpush1.msra.mxu0 0.0
    %154 = vmatprep.subr.mxu0 0.0
    %155 = vmatpush1.msra.mxu0 0.0
    %156 = vmatprep.subr.mxu0 0.0
    %157 = vmatpush1.msra.mxu0 0.0
    %158 = vmatprep.subr.mxu0 0.0
    %159 = vmatpush1.msra.mxu0 0.0
    %160 = vmatprep.subr.mxu0 0.0
    %161 = vmatpush1.msra.mxu0 0.0
    %162 = vmatprep.subr.mxu0 0.0
    %163 = vmatpush1.msra.mxu0 0.0
    %164 = vmatprep.subr.mxu0 0.0
    %165 = vmatpush1.msra.mxu0 0.0
    %166 = vmatprep.subr.mxu0 0.0
    %167 = vmatpush1.msra.mxu0 0.0
    %168 = vmatprep.subr.mxu0 0.0
    %169 = vmatpush1.msra.mxu0 0.0
    %170 = vmatprep.subr.mxu0 0.0
    %171 = vmatpush1.msra.mxu0 0.0
    %172 = vmatprep.subr.mxu0 0.0
    %173 = vmatpush1.msra.mxu0 0.0
    %174 = vmatprep.subr.mxu0 0.0
    %175 = vmatpush1.msra.mxu0 0.0
    %176 = vmatprep.subr.mxu0 0.0
    %177 = vmatpush1.msra.mxu0 0.0
    %178 = vmatprep.subr.mxu0 0.0
    %179 = vmatpush1.msra.mxu0 0.0
    %180 = vmatprep.subr.mxu0 0.0
    %181 = vmatpush1.msra.mxu0 0.0
    %182 = vmatprep.subr.mxu0 0.0
    %183 = vmatpush1.msra.mxu0 0.0
    %184 = vmatprep.subr.mxu0 0.0
    %185 = vmatpush1.msra.mxu0 0.0
    %186 = vmatprep.subr.mxu0 0.0
    %187 = vmatpush1.msra.mxu0 0.0
    %188 = vmatprep.subr.mxu0 0.0
    %189 = vmatpush1.msra.mxu0 0.0
    %190 = vmatprep.subr.mxu0 0.0
    %191 = vmatpush1.msra.mxu0 0.0
    %192 = vmatprep.subr.mxu0 0.0
    %193 = vmatpush1.msra.mxu0 0.0
    %194 = vmatprep.subr.mxu0 0.0
    %195 = vmatpush1.msra.mxu0 0.0
    %196 = vmatprep.subr.mxu0 0.0
    %197 = vmatpush1.msra.mxu0 0.0
    %198 = vmatprep.subr.mxu0 0.0
    %199 = vmatpush1.msra.mxu0 0.0
    %200 = vmatprep.subr.mxu0 0.0
    %201 = vmatpush1.msra.mxu0 0.0
    %202 = vmatprep.subr.mxu0 0.0
    %203 = vmatpush1.msra.mxu0 0.0
    %204 = vmatprep.subr.mxu0 0.0
    %205 = vmatpush1.msra.mxu0 0.0
    %206 = vmatprep.subr.mxu0 0.0
    %207 = vmatpush1.msra.mxu0 0.0
    %208 = vmatprep.subr.mxu0 0.0
    %209 = vmatpush1.msra.mxu0 0.0
    %210 = vmatprep.subr.mxu0 0.0
    %211 = vmatpush1.msra.mxu0 0.0
    %212 = vmatprep.mubr.f32.mxu0 0.0
    %213 = vmatmul.mubr.f32.gmra.mrb[0].mxu0 %v140
    %v214 = vpop.f32.mrb[0].mxu0
    %v215 = vadd.f32 %v136, %v214
    %v216 = vpop.f32.mrb[0].mxu0
    %217 = vmatprep.mubr.f32.mxu0 0.0
    %218 = vmatmul.mubr.f32.gmra.mrb[0].mxu0 %v143
    %v219 = vpop.f32.mrb[0].mxu0
    %v220 = vadd.f32 %v136, %v219
    %v221 = vpop.f32.mrb[0].mxu0
    %222 = vmatprep.mubr.f32.mxu0 0.0
    %223 = vmatmul.mubr.f32.gmra.mrb[0].mxu0 %v146
    %v224 = vpop.f32.mrb[0].mxu0
    %v225 = vadd.f32 %v136, %v224
    %v226 = vpop.f32.mrb[0].mxu0
    %227 = vdwg.mxu0
    %v228 = vld [vmem:[%s4] sm:$0x1]
    %vm229 = vcmp.ne.s32.totalorder %v228, 0
    %v230 = vand.u32 2147483647, %v215
    %vm231 = vcmp.le.f32.partialorder %v230, 0.7853982
    %vm232 = vcmp.lt.s32.totalorder %v215, 0
    %v233 = vand.u32 %v215, 2139095040
    %v234 = vshrl.u32 %v233, 23
    %v235 = vsub.s32 %v234, 127
    %v236 = vand.u32 2147483647, %v215
    %v237 = vand.u32 %v236, 8388607
    %v238 = vor.u32 %v237, 8388608
    %v239 = vsub.s32 0, %v238
    %v240 = vadd.s32 %v235, 1
    %vm241 = vcmp.gt.s32.totalorder %v240, 0
    %v242 = vsel %vm241, %v240, 0
    %v243 = vshrl.u32 %v242, 5
    %v244 = vand.u32 %v242, 31
    %v245 = vsub.s32 32, %v244
    %v246 = vshrl.u32 683565275, %v245
    %v247 = vshll.u32 683565275, %v244
    %v248 = vshrl.u32 2475754826, %v245
    %v249 = vor.u32 %v247, %v248
    %v250 = vshll.u32 2475754826, %v244
    %v251 = vshrl.u32 2131351028, %v245
    %v252 = vor.u32 %v250, %v251
    %v253 = vshll.u32 2131351028, %v244
    %v254 = vshrl.u32 2102212464, %v245
    %v255 = vor.u32 %v253, %v254
    %v256 = vshll.u32 2102212464, %v244
    %v257 = vshrl.u32 920167782, %v245
    %v258 = vor.u32 %v256, %v257
    %v259 = vshll.u32 920167782, %v244
    %v260 = vshrl.u32 1326507024, %v245
    %v261 = vor.u32 %v259, %v260
    %vm262 = vcmp.lt.s32.totalorder %v243, 1
    %vm263 = vcmp.lt.s32.totalorder %v243, 2
    %vm264 = vcmp.lt.s32.totalorder %v243, 3
    %vm265 = vcmp.lt.s32.totalorder %v243, 4
    %v266 = vsel %vm262, %v246, %v249
    %v267 = vsel %vm265, %v255, 2102212464
    %v268 = vsel %vm264, %v252, %v267
    %v269 = vsel %vm263, %v266, %v268
    %v270 = vsel %vm262, %v249, %v252
    %v271 = vsel %vm265, %v258, 920167782
    %v272 = vsel %vm264, %v255, %v271
    %v273 = vsel %vm263, %v270, %v272
    %v274 = vsel %vm262, %v252, %v255
    %v275 = vsel %vm265, %v261, 1326507024
    %v276 = vsel %vm264, %v258, %v275
    %v277 = vsel %vm263, %v274, %v276
    %v278 = vshll.u32 %v238, 8
    %v279 = vmul.u32.u64.compose %v278, %v277
    %v280 = vextract.low.u32 %v279
    %v281 = vextract.high.u32 %v279
    %v282 = vmul.u32.u64.compose %v278, %v273
    %v283 = vextract.low.u32 %v282
    %v284 = vextract.high.u32 %v282
    %v285 = vmul.u32 %v278, %v269
    %v286 = vadd.s32 %v281, %v283
    %vm287 = vc.u32 %v281, %v283
    %v288 = vadd.s32 %v284, 1
    %v289 = vsel %vm287, %v288, %v284
    %v290 = vadd.s32 %v285, %v289
    %v291 = vadd.s32 %v290, 536870912
    %v292 = vshrl.u32 %v291, 30
    %v293 = vshll.u32 %v292, 30
    %v294 = vsub.s32 %v290, %v293
    %vm295 = vcmp.lt.s32.totalorder %v294, 0
    %v296 = vsub.s32 0, %v294
    %v297 = vsel %vm295, %v296, %v294
    %v298 = vclz %v297
    %v299 = vsub.s32 %v298, 2
    %vm300 = vcmp.gt.s32.totalorder 0, %v299
    %v301 = vsel %vm300, 0, %v299
    %v302 = vsub.s32 32, %v301
    %v303 = vshll.u32 %v294, %v301
    %v304 = vshrl.u32 %v286, %v302
    %v305 = vor.u32 %v303, %v304
    %v306 = vsub.s32 4294967266, %v301
    %v307 = vadd.s32 %v306, 127
    %v308 = vshll.u32 %v307, 23
    %v309 = vor.u32 4788187, %v308
    %v310 = vand.u32 2147483647, %v309
    %v312 = vcvt.s32.f32 %v305
    %v313 = vmul.f32 %v312, %v310
    %v314 = vxor.u32 %v313, 2147483648
    %v315 = vsel %vm232, %v314, %v313
    %v316 = vsub.s32 4, %v292
    %v317 = vsel %vm232, %v316, %v292
    %v318 = vsel %vm231, %v215, %v315
    %v319 = vsel %vm231, 0, %v317
    %v320 = vcosq.f32.pop %v318
    %v321 = vsinq.f32.pop %v318
    %vm322 = vweird.f32 %v215
    %v323 = vand.u32 %v319, 3
    %vm324 = vcmp.lt.s32.totalorder %v323, 2
    %vm325 = vcmp.eq.s32.totalorder %v323, 0
    %v326 = vxor.u32 %v321, 2147483648
    %v327 = vsel %vm325, %v320, %v326
    %vm328 = vcmp.eq.s32.totalorder %v323, 2
    %v329 = vxor.u32 %v320, 2147483648
    %v330 = vsel %vm328, %v329, %v321
    %v331 = vsel %vm324, %v327, %v330
    %v332 = vsel %vm322, nan, %v331
    %v333 = vand.u32 2147483647, %v220
    %vm334 = vcmp.le.f32.partialorder %v333, 0.7853982
    %vm335 = vcmp.lt.s32.totalorder %v220, 0
    %v336 = vand.u32 %v220, 2139095040
    %v337 = vshrl.u32 %v336, 23
    %v338 = vsub.s32 %v337, 127
    %v339 = vand.u32 2147483647, %v220
    %v340 = vand.u32 %v339, 8388607
    %v341 = vor.u32 %v340, 8388608
    %v342 = vsub.s32 0, %v341
    %v343 = vadd.s32 %v338, 1
    %vm344 = vcmp.gt.s32.totalorder %v343, 0
    %v345 = vsel %vm344, %v343, 0
    %v346 = vshrl.u32 %v345, 5
    %v347 = vand.u32 %v345, 31
    %v348 = vsub.s32 32, %v347
    %v349 = vshrl.u32 683565275, %v348
    %v350 = vshll.u32 683565275, %v347
    %v351 = vshrl.u32 2475754826, %v348
    %v352 = vor.u32 %v350, %v351
    %v353 = vshll.u32 2475754826, %v347
    %v354 = vshrl.u32 2131351028, %v348
    %v355 = vor.u32 %v353, %v354
    %v356 = vshll.u32 2131351028, %v347
    %v357 = vshrl.u32 2102212464, %v348
    %v358 = vor.u32 %v356, %v357
    %v359 = vshll.u32 2102212464, %v347
    %v360 = vshrl.u32 920167782, %v348
    %v361 = vor.u32 %v359, %v360
    %v362 = vshll.u32 920167782, %v347
    %v363 = vshrl.u32 1326507024, %v348
    %v364 = vor.u32 %v362, %v363
    %vm365 = vcmp.lt.s32.totalorder %v346, 1
    %vm366 = vcmp.lt.s32.totalorder %v346, 2
    %vm367 = vcmp.lt.s32.totalorder %v346, 3
    %vm368 = vcmp.lt.s32.totalorder %v346, 4
    %v369 = vsel %vm365, %v349, %v352
    %v370 = vsel %vm368, %v358, 2102212464
    %v371 = vsel %vm367, %v355, %v370
    %v372 = vsel %vm366, %v369, %v371
    %v373 = vsel %vm365, %v352, %v355
    %v374 = vsel %vm368, %v361, 920167782
    %v375 = vsel %vm367, %v358, %v374
    %v376 = vsel %vm366, %v373, %v375
    %v377 = vsel %vm365, %v355, %v358
    %v378 = vsel %vm368, %v364, 1326507024
    %v379 = vsel %vm367, %v361, %v378
    %v380 = vsel %vm366, %v377, %v379
    %v381 = vshll.u32 %v341, 8
    %v382 = vmul.u32.u64.compose %v381, %v380
    %v383 = vextract.low.u32 %v382
    %v384 = vextract.high.u32 %v382
    %v385 = vmul.u32.u64.compose %v381, %v376
    %v386 = vextract.low.u32 %v385
    %v387 = vextract.high.u32 %v385
    %v388 = vmul.u32 %v381, %v372
    %v389 = vadd.s32 %v384, %v386
    %vm390 = vc.u32 %v384, %v386
    %v391 = vadd.s32 %v387, 1
    %v392 = vsel %vm390, %v391, %v387
    %v393 = vadd.s32 %v388, %v392
    %v394 = vadd.s32 %v393, 536870912
    %v395 = vshrl.u32 %v394, 30
    %v396 = vshll.u32 %v395, 30
    %v397 = vsub.s32 %v393, %v396
    %vm398 = vcmp.lt.s32.totalorder %v397, 0
    %v399 = vsub.s32 0, %v397
    %v400 = vsel %vm398, %v399, %v397
    %v401 = vclz %v400
    %v402 = vsub.s32 %v401, 2
    %vm403 = vcmp.gt.s32.totalorder 0, %v402
    %v404 = vsel %vm403, 0, %v402
    %v405 = vsub.s32 32, %v404
    %v406 = vshll.u32 %v397, %v404
    %v407 = vshrl.u32 %v389, %v405
    %v408 = vor.u32 %v406, %v407
    %v409 = vsub.s32 4294967266, %v404
    %v410 = vadd.s32 %v409, 127
    %v411 = vshll.u32 %v410, 23
    %v412 = vor.u32 4788187, %v411
    %v413 = vand.u32 2147483647, %v412
    %v415 = vcvt.s32.f32 %v408
    %v416 = vmul.f32 %v415, %v413
    %v417 = vxor.u32 %v416, 2147483648
    %v418 = vsel %vm335, %v417, %v416
    %v419 = vsub.s32 4, %v395
    %v420 = vsel %vm335, %v419, %v395
    %v421 = vsel %vm334, %v220, %v418
    %v422 = vsel %vm334, 0, %v420
    %v423 = vcosq.f32.pop %v421
    %v424 = vsinq.f32.pop %v421
    %vm425 = vweird.f32 %v220
    %v426 = vand.u32 %v422, 3
    %vm427 = vcmp.lt.s32.totalorder %v426, 2
    %vm428 = vcmp.eq.s32.totalorder %v426, 0
    %v429 = vxor.u32 %v424, 2147483648
    %v430 = vsel %vm428, %v423, %v429
    %vm431 = vcmp.eq.s32.totalorder %v426, 2
    %v432 = vxor.u32 %v423, 2147483648
    %v433 = vsel %vm431, %v432, %v424
    %v434 = vsel %vm427, %v430, %v433
    %v435 = vsel %vm425, nan, %v434
    %v436 = vand.u32 2147483647, %v225
    %vm437 = vcmp.le.f32.partialorder %v436, 0.7853982
    %vm438 = vcmp.lt.s32.totalorder %v225, 0
    %v439 = vand.u32 %v225, 2139095040
    %v440 = vshrl.u32 %v439, 23
    %v441 = vsub.s32 %v440, 127
    %v442 = vand.u32 2147483647, %v225
    %v443 = vand.u32 %v442, 8388607
    %v444 = vor.u32 %v443, 8388608
    %v445 = vsub.s32 0, %v444
    %v446 = vadd.s32 %v441, 1
    %vm447 = vcmp.gt.s32.totalorder %v446, 0
    %v448 = vsel %vm447, %v446, 0
    %v449 = vshrl.u32 %v448, 5
    %v450 = vand.u32 %v448, 31
    %v451 = vsub.s32 32, %v450
    %v452 = vshrl.u32 683565275, %v451
    %v453 = vshll.u32 683565275, %v450
    %v454 = vshrl.u32 2475754826, %v451
    %v455 = vor.u32 %v453, %v454
    %v456 = vshll.u32 2475754826, %v450
    %v457 = vshrl.u32 2131351028, %v451
    %v458 = vor.u32 %v456, %v457
    %v459 = vshll.u32 2131351028, %v450
    %v460 = vshrl.u32 2102212464, %v451
    %v461 = vor.u32 %v459, %v460
    %v462 = vshll.u32 2102212464, %v450
    %v463 = vshrl.u32 920167782, %v451
    %v464 = vor.u32 %v462, %v463
    %v465 = vshll.u32 920167782, %v450
    %v466 = vshrl.u32 1326507024, %v451
    %v467 = vor.u32 %v465, %v466
    %vm468 = vcmp.lt.s32.totalorder %v449, 1
    %vm469 = vcmp.lt.s32.totalorder %v449, 2
    %vm470 = vcmp.lt.s32.totalorder %v449, 3
    %vm471 = vcmp.lt.s32.totalorder %v449, 4
    %v472 = vsel %vm468, %v452, %v455
    %v473 = vsel %vm471, %v461, 2102212464
    %v474 = vsel %vm470, %v458, %v473
    %v475 = vsel %vm469, %v472, %v474
    %v476 = vsel %vm468, %v455, %v458
    %v477 = vsel %vm471, %v464, 920167782
    %v478 = vsel %vm470, %v461, %v477
    %v479 = vsel %vm469, %v476, %v478
    %v480 = vsel %vm468, %v458, %v461
    %v481 = vsel %vm471, %v467, 1326507024
    %v482 = vsel %vm470, %v464, %v481
    %v483 = vsel %vm469, %v480, %v482
    %v484 = vshll.u32 %v444, 8
    %v485 = vmul.u32.u64.compose %v484, %v483
    %v486 = vextract.low.u32 %v485
    %v487 = vextract.high.u32 %v485
    %v488 = vmul.u32.u64.compose %v484, %v479
    %v489 = vextract.low.u32 %v488
    %v490 = vextract.high.u32 %v488
    %v491 = vmul.u32 %v484, %v475
    %v492 = vadd.s32 %v487, %v489
    %vm493 = vc.u32 %v487, %v489
    %v494 = vadd.s32 %v490, 1
    %v495 = vsel %vm493, %v494, %v490
    %v496 = vadd.s32 %v491, %v495
    %v497 = vadd.s32 %v496, 536870912
    %v498 = vshrl.u32 %v497, 30
    %v499 = vshll.u32 %v498, 30
    %v500 = vsub.s32 %v496, %v499
    %vm501 = vcmp.lt.s32.totalorder %v500, 0
    %v502 = vsub.s32 0, %v500
    %v503 = vsel %vm501, %v502, %v500
    %v504 = vclz %v503
    %v505 = vsub.s32 %v504, 2
    %vm506 = vcmp.gt.s32.totalorder 0, %v505
    %v507 = vsel %vm506, 0, %v505
    %v508 = vsub.s32 32, %v507
    %v509 = vshll.u32 %v500, %v507
    %v510 = vshrl.u32 %v492, %v508
    %v511 = vor.u32 %v509, %v510
    %v512 = vsub.s32 4294967266, %v507
    %v513 = vadd.s32 %v512, 127
    %v514 = vshll.u32 %v513, 23
    %v515 = vor.u32 4788187, %v514
    %v516 = vand.u32 2147483647, %v515
    %v518 = vcvt.s32.f32 %v511
    %v519 = vmul.f32 %v518, %v516
    %v520 = vxor.u32 %v519, 2147483648
    %v521 = vsel %vm438, %v520, %v519
    %v522 = vsub.s32 4, %v498
    %v523 = vsel %vm438, %v522, %v498
    %v524 = vsel %vm437, %v225, %v521
    %v525 = vsel %vm437, 0, %v523
    %v526 = vcosq.f32.pop %v524
    %v527 = vsinq.f32.pop %v524
    %vm528 = vweird.f32 %v225
    %v529 = vand.u32 %v525, 3
    %vm530 = vcmp.lt.s32.totalorder %v529, 2
    %vm531 = vcmp.eq.s32.totalorder %v529, 0
    %v532 = vxor.u32 %v527, 2147483648
    %v533 = vsel %vm531, %v526, %v532
    %vm534 = vcmp.eq.s32.totalorder %v529, 2
    %v535 = vxor.u32 %v526, 2147483648
    %v536 = vsel %vm534, %v535, %v527
    %v537 = vsel %vm530, %v533, %v536
    %v538 = vsel %vm528, nan, %v537
    %v539 = vsel %vm229, 1, 0
    %v540 = vlaneseq
    %v541 = vshrl.u32 %v540, 7
    %v542 = vsub.s32 0, %v541
    %v543 = vrot.slane %v539, %v542
    %vm544 = vcmp.eq.s32.totalorder %v543, 1
    %v545 = vsel %vm544, %v332, %v215
    %v546 = vsel %vm544, %v435, %v220
    %v547 = vsel %vm544, %v538, %v225
    %s548 = sld [smem:[#allocation2]]
    %v549 = vstv %s548
    %v550 = vmul.f32 %v545, %v549
    %v551 = vmul.f32 %v546, %v549
    %v552 = vmul.f32 %v547, %v549
    %553 = vst [vmem:[#allocation3] sm:$0xff] %v550
    %554 = vst [vmem:[#allocation3 + $0x8] sm:$0xff] %v551
    %555 = vst [vmem:[#allocation3 + $0x10] sm:$0xff] %v552
    // Predicated region
    $region26: #{tpu_custom_call.1} parent=1 // pred_check
      _
    $region27: #{tpu_custom_call.1} parent=1 // pred_check_branch
      %557 = sbr.rel (0) target = $region29
    $region28: #{tpu_custom_call.1} parent=1 // pred_region
      %s559 = ssub.s32 384, 384
      %560 = vsyncadd [#allocation4], %s559
      %s561 = sshll.u32 [#allocation3], 4
      %s562 = int_to_ptr.vmem [resolvable:$true] %s561
      %567 = dma.vmem_to_hbm [thread:$0]  %s562, 384, %s6, [#allocation4], 128, 128, 8
    $region29: #{tpu_custom_call.1} parent=1 // pred_fallthru
      _
    // Predicated region
    $region30: #{tpu_custom_call.1} parent=1 // pred_check
      _
    $region31: #{tpu_custom_call.1} parent=1 // pred_check_branch
      %569 = sbr.rel (0) target = $region33
    $region32: #{tpu_custom_call.1} parent=1 // pred_region
      %570 = dma.done [#allocation4], 384
    $region33: #{tpu_custom_call.1} parent=1 // pred_fallthru
      _
    %571 = vsyncpa [#allocation4], 1

</llo_original>
